<compile_context>
chip_gen: v7x
topology: tpu7x:2x2x1
jax: 0.10.0
libtpu: 0.0.40
codegen_flags: <defaults>
</compile_context>

<pallas_src>
import functools

import jax
import jax.numpy as jnp
from jax import lax
from jax.experimental import pallas as pl
from jax.experimental.pallas import tpu as pltpu

_MB = 1024 * 1024


def _center_loss_kernel(ph_ref, gh_ref,
                        po0_ref, po1_ref, go0_ref, go1_ref,
                        ps0_ref, ps1_ref, gs0_ref, gs1_ref,
                        mk_ref, out_ref, acc_ref, *,
                        n_inner, tile_hw, hw_valid, hw_padded,
                        lambda_off, lambda_size, posthresh, smallweight):
    i = pl.program_id(1)

    # ----- init accumulators at the start of each core's inner sweep -----
    @pl.when(i == 0)
    def _init():
        acc_ref[0] = jnp.float32(0.0)   # num_pos
        acc_ref[1] = jnp.float32(0.0)   # focal sum (pos + neg, alpha == 1)
        acc_ref[2] = jnp.float32(0.0)   # lambda_off*|off| + lambda_size*|size| (masked)
        acc_ref[3] = jnp.float32(0.0)   # mask sum

    # ----- focal partials (pos/neg branches fused: 1 log + 1 sqrt / element) -----
    ph = ph_ref[...].astype(jnp.float32)
    gh = gh_ref[...].astype(jnp.float32)

    pred = jnp.clip(ph, 0.0001, 1.0 - 0.0001)
    is_pos = gh >= posthresh
    pos_f = is_pos.astype(jnp.float32)

    # both branches are  log(x) * (1 - x)**1.5 * w  with x = pred (pos) / 1-pred (neg)
    x = jnp.where(is_pos, pred, 1.0 - pred)
    one_m_x = 1.0 - x
    pow_term = one_m_x * jnp.sqrt(one_m_x)            # (1 - x)**1.5   (gamma = 1.5)

    t = 1.0 - gh
    t2 = t * t
    neg_w = t2 * t2 * t                               # (1 - gh)**5    (beta = 5)
    # posthresh (0.8) > 0.5  =>  positive-branch weight is always `smallweight`.
    w = jnp.where(is_pos, jnp.float32(smallweight),
                  jnp.where(gh > 0.5, jnp.float32(smallweight), jnp.float32(1.0)) * neg_w)

    focal_elem = jnp.log(x) * pow_term * w            # == pos_loss + neg_loss elementwise

    if hw_padded != hw_valid:
        # Exact-zero contribution from the wrapper's zero-padded lanes.
        # (padded gh == 0 < posthresh, so num_pos needs no masking.)
        start = (pl.program_id(0) * n_inner + i) * tile_hw
        lane = lax.broadcasted_iota(jnp.int32, focal_elem.shape, 1)
        focal_elem = jnp.where(start + lane < hw_valid, focal_elem, 0.0)

    acc_ref[0] += jnp.sum(pos_f)
    acc_ref[1] += jnp.sum(focal_elem)

    # ----- masked L1 partials (offset & size, both box channels, one reduction) -----
    m = mk_ref[...].astype(jnp.float32)               # (B, T); zero on padded lanes
    off_abs = (jnp.abs(po0_ref[...].astype(jnp.float32) - go0_ref[...].astype(jnp.float32))
               + jnp.abs(po1_ref[...].astype(jnp.float32) - go1_ref[...].astype(jnp.float32)))
    size_abs = (jnp.abs(ps0_ref[...].astype(jnp.float32) - gs0_ref[...].astype(jnp.float32))
                + jnp.abs(ps1_ref[...].astype(jnp.float32) - gs1_ref[...].astype(jnp.float32)))
    # exact for any mask >= 0:  |p - g| * m == |p*m - g*m|
    reg_elem = (lambda_off * off_abs + lambda_size * size_abs) * m

    acc_ref[2] += jnp.sum(reg_elem)
    acc_ref[3] += jnp.sum(m)

    # ----- epilogue: emit the 4 partials as a full (8, 128) block (unmasked store) -----
    @pl.when(i == pl.num_programs(1) - 1)
    def _finalize():
        row = lax.broadcasted_iota(jnp.int32, (8, 128), 0)
        lane = lax.broadcasted_iota(jnp.int32, (8, 128), 1)
        vec = jnp.where((row == 0) & (lane == 0), acc_ref[0], jnp.float32(0.0))
        vec = jnp.where((row == 0) & (lane == 1), acc_ref[1], vec)
        vec = jnp.where((row == 0) & (lane == 2), acc_ref[2], vec)
        vec = jnp.where((row == 0) & (lane == 3), acc_ref[3], vec)
        out_ref[...] = vec


def _device_vmem_params():
    """(double-buffered input budget, vmem_limit_bytes, tensorcores per device)."""
    kind = ""
    try:
        kind = jax.devices()[0].device_kind.lower()
    except Exception:
        pass
    if "v5 lite" in kind or "v5e" in kind or "v5lite" in kind or "v6" in kind:
        return 80 * _MB, 104 * _MB, 1     # 128 MiB VMEM, single TensorCore
    if "v7" in kind or "7x" in kind:
        return 24 * _MB, 56 * _MB, 2      # 64 MiB VMEM per TC, 2 TensorCores
    if "v2" in kind or "v3" in kind or "v4" in kind or "v5" in kind:
        return 48 * _MB, 64 * _MB, 1
    return 24 * _MB, 56 * _MB, 1          # unknown chip: stay conservative


def _padded_rows(r):
    return ((r + 7) // 8) * 8


def _choose_tile_hw(hw_pad, bytes_per_lane, budget_bytes):
    """Largest 128-multiple divisor of hw_pad whose double-buffered input blocks
    fit the per-core VMEM budget."""
    cap = max(128, int(budget_bytes // (2 * bytes_per_lane)))
    cap = min(cap, hw_pad)
    cap -= cap % 128
    cap = max(cap, 128)
    for cand in range(cap, 127, -128):
        if hw_pad % cand == 0:
            return cand
    return 128


def center_loss(preds, targets, lambda_hm=1.0, lambda_off=1.0, lambda_size=0.1,
                tile_hw=None):
    pred_heatmap, pred_size, pred_offset = preds
    gt_heatmap, gt_offset, gt_size, mask = targets

    B, C, H, W = pred_heatmap.shape
    HW = H * W
    RH = B * C

    budget, vmem_limit, n_cores = _device_vmem_params()

    # Per-lane-column VMEM bytes (sublane-padded rows) of all 11 input streams.
    bpl = (_padded_rows(RH) * (pred_heatmap.dtype.itemsize + gt_heatmap.dtype.itemsize)
           + 2 * _padded_rows(B) * (pred_offset.dtype.itemsize + gt_offset.dtype.itemsize
                                    + pred_size.dtype.itemsize + gt_size.dtype.itemsize)
           + _padded_rows(B) * mask.dtype.itemsize)

    hw_pad = ((HW + 127) // 128) * 128
    if tile_hw is None:
        tile_hw = _choose_tile_hw(hw_pad, bpl, budget)
    assert hw_pad % tile_hw == 0 and tile_hw % 128 == 0, (hw_pad, tile_hw)

    n_tiles = hw_pad // tile_hw
    n_split = 1
    if n_cores >= 2:
        if n_tiles % 2 != 0:
            if tile_hw % 256 == 0:
                tile_hw //= 2                 # halve the tile -> even tile count
            else:
                hw_pad += tile_hw             # one extra all-padding (exactly masked) tile
            n_tiles = hw_pad // tile_hw
        n_split = 2
    n_inner = n_tiles // n_split
    nblk = hw_pad // tile_hw                  # lane blocks per box channel

    pad = hw_pad - HW

    def lane2d(x, rows):                      # (..., H, W) -> (rows, hw_pad)
        x2 = x.reshape(rows, HW)
        return jnp.pad(x2, ((0, 0), (0, pad))) if pad else x2

    def lane2d_reg(x):                        # (B, 2, H, W) -> (B, 2*hw_pad), free when pad==0
        x3 = x.reshape(B, 2, HW)
        if pad:
            x3 = jnp.pad(x3, ((0, 0), (0, 0), (0, pad)))
        return x3.reshape(B, 2 * hw_pad)

    ph = lane2d(pred_heatmap, RH)
    gh = lane2d(gt_heatmap, RH)
    po = lane2d_reg(pred_offset)
    go = lane2d_reg(gt_offset)
    ps = lane2d_reg(pred_size)
    gs = lane2d_reg(gt_size)
    mk = lane2d(mask, B)                      # zero mask on padded lanes

    def map_c0(g, i):
        return (0, g * n_inner + i)

    def map_c1(g, i):
        return (0, nblk + g * n_inner + i)

    hm_spec = pl.BlockSpec((RH, tile_hw), map_c0)
    rg0_spec = pl.BlockSpec((B, tile_hw), map_c0)
    rg1_spec = pl.BlockSpec((B, tile_hw), map_c1)
    mk_spec = pl.BlockSpec((B, tile_hw), map_c0)

    kernel = functools.partial(
        _center_loss_kernel,
        n_inner=n_inner, tile_hw=tile_hw, hw_valid=HW, hw_padded=hw_pad,
        lambda_off=float(lambda_off), lambda_size=float(lambda_size),
        posthresh=0.8, smallweight=2.0)

    hm_elems = RH * hw_pad
    reg_elems = 2 * B * hw_pad
    in_bytes = (ph.size * ph.dtype.itemsize + gh.size * gh.dtype.itemsize
                + po.size * po.dtype.itemsize + go.size * go.dtype.itemsize
                + ps.size * ps.dtype.itemsize + gs.size * gs.dtype.itemsize
                + mk.size * mk.dtype.itemsize)
    cost = pl.CostEstimate(flops=int(22 * hm_elems + 10 * reg_elems),
                           transcendentals=int(2 * hm_elems),
                           bytes_accessed=int(in_bytes + n_split * 8 * 128 * 4))

    out = pl.pallas_call(
        kernel,
        out_shape=jax.ShapeDtypeStruct((n_split * 8, 128), jnp.float32),
        grid_spec=pltpu.PrefetchScalarGridSpec(
            num_scalar_prefetch=0,
            grid=(n_split, n_inner),
            in_specs=[hm_spec, hm_spec,
                      rg0_spec, rg1_spec, rg0_spec, rg1_spec,
                      rg0_spec, rg1_spec, rg0_spec, rg1_spec,
                      mk_spec],
            out_specs=pl.BlockSpec((8, 128), lambda g, i: (g, 0)),
            scratch_shapes=[pltpu.SMEM((4,), jnp.float32)]),
        compiler_params=pltpu.CompilerParams(
            dimension_semantics=(pltpu.PARALLEL, pltpu.ARBITRARY),
            vmem_limit_bytes=int(vmem_limit)),
        cost_estimate=cost,
    )(ph, gh, po, po, go, go, ps, ps, gs, gs, mk)

    # Tiny final combine (per-core partials -> scalar loss).
    parts = out.reshape(n_split, 8, 128)[:, 0, :4].sum(axis=0)
    num_pos, focal_sum, reg_sum, m_sum = parts[0], parts[1], parts[2], parts[3]
    denom = jnp.where(num_pos == 0.0, 1.0, num_pos)   # num_pos==0 -> loss_hm = -neg_sum
    loss_hm = -focal_sum / denom
    loss_reg = reg_sum / (m_sum + 1e-07)              # lambdas already folded in
    return lambda_hm * loss_hm + loss_reg


# ---------------- pure-JAX reference (mirrors the PyTorch module) ----------------
def _ref_center_loss(preds, targets, l1=1.0, l2=0.1, l3=1.0):
    pred_heatmap, pred_size, pred_offset = preds
    gt_heatmap, gt_offset, gt_size, mask = targets

    def focal(pred, target, gamma=1.5, alpha=1.0, beta=5.0, posthresh=0.8, smallweight=2.0):
        pos_inds = (target >= posthresh).astype(jnp.float32)
        neg_inds = (target < posthresh).astype(jnp.float32)
        neg_weights = jnp.power(1.0 - target, beta)
        pred = jnp.clip(pred, 0.0001, 1.0 - 0.0001)
        weight = jnp.where(target > 0.5, smallweight, 1.0)
        pos_loss = jnp.log(pred) * jnp.power(1.0 - pred, gamma) * pos_inds * weight
        neg_loss = jnp.log(1.0 - pred) * jnp.power(pred, gamma) * neg_inds * neg_weights * weight
        num_pos = pos_inds.sum()
        pos_sum = pos_loss.sum() * alpha
        neg_sum = neg_loss.sum()
        return jnp.where(num_pos == 0, -neg_sum, -(pos_sum + neg_sum) / num_pos)

    def l1_loss(pred, target, mask):
        em = jnp.repeat(mask[:, None, :, :], 2, axis=1)
        loss = jnp.sum(jnp.abs(pred * em - target * em))
        return loss / (mask.sum() + 1e-07)

    loss_hm = focal(pred_heatmap.astype(jnp.float32), gt_heatmap.astype(jnp.float32))
    loss_off = l1_loss(pred_offset.astype(jnp.float32), gt_offset.astype(jnp.float32),
                       mask.astype(jnp.float32))
    loss_size = l1_loss(pred_size.astype(jnp.float32), gt_size.astype(jnp.float32),
                        mask.astype(jnp.float32))
    return l1 * loss_hm + l3 * loss_off + l2 * loss_size


if __name__ == "__main__":
    key = jax.random.PRNGKey(0)

    def make_inputs(B, C, H, W, k, pos_scale=1.0):
        ks = jax.random.split(k, 7)
        pred_heatmap = jax.random.uniform(ks[0], (B, C, H, W), jnp.float32)
        pred_size = jax.random.uniform(ks[1], (B, 2, H, W), jnp.float32) * 4.0
        pred_offset = jax.random.uniform(ks[2], (B, 2, H, W), jnp.float32)
        gt_heatmap = jax.random.uniform(ks[3], (B, C, H, W), jnp.float32) * pos_scale
        gt_offset = jax.random.uniform(ks[4], (B, 2, H, W), jnp.float32)
        gt_size = jax.random.uniform(ks[5], (B, 2, H, W), jnp.float32) * 4.0
        mask = (jax.random.uniform(ks[6], (B, H, W), jnp.float32) > 0.5).astype(jnp.float32)
        return (pred_heatmap, pred_size, pred_offset), (gt_heatmap, gt_offset, gt_size, mask)

    def check(name, preds, targets, **kw):
        ref = jax.block_until_ready(_ref_center_loss(preds, targets))
        got = jax.block_until_ready(center_loss(preds, targets, **kw))
        assert jnp.isfinite(got), (name, got)
        assert jnp.allclose(got, ref, rtol=2e-4, atol=1e-5), (name, got, ref)

    keys = jax.random.split(key, 3)

    # 1) H*W multiple of 128, default (largest) lane tile
    p1, t1 = make_inputs(2, 4, 32, 32, keys[0])
    check("default", p1, t1)

    # 2) forced small tile -> multi-step pipelined accumulation path
    check("tiled", p1, t1, tile_hw=128)

    # 3) H*W not a multiple of 128 (zero-pad + in-kernel lane masking), bf16 transport
    p3, t3 = make_inputs(2, 4, 30, 30, keys[1])
    p3b = tuple(x.astype(jnp.bfloat16) for x in p3)
    t3b = tuple(x.astype(jnp.bfloat16) for x in t3[:3]) + (t3[3],)
    ref3 = jax.block_until_ready(_ref_center_loss(p3b, t3b))
    got3 = jax.block_until_ready(center_loss(p3b, t3b))
    assert jnp.isfinite(got3), got3
    assert jnp.allclose(got3, ref3, rtol=2e-4, atol=1e-5), (got3, ref3)

    # 4) num_pos == 0 branch (all gt heatmap values < posthresh)
    p4, t4 = make_inputs(2, 4, 32, 32, keys[2], pos_scale=0.5)
    check("no_pos", p4, t4)

    print("KERNEL_OK")
</pallas_src>

<mosaic_0001>
module attributes {stable_mosaic.version = 11 : i64} {
  func.func @_center_loss_kernel(%arg0: i32, %arg1: i32, %arg2: memref<8x1024xf32, #tpu.memory_space<vmem>>, %arg3: memref<8x1024xf32, #tpu.memory_space<vmem>>, %arg4: memref<2x1024xf32, #tpu.memory_space<vmem>>, %arg5: memref<2x1024xf32, #tpu.memory_space<vmem>>, %arg6: memref<2x1024xf32, #tpu.memory_space<vmem>>, %arg7: memref<2x1024xf32, #tpu.memory_space<vmem>>, %arg8: memref<2x1024xf32, #tpu.memory_space<vmem>>, %arg9: memref<2x1024xf32, #tpu.memory_space<vmem>>, %arg10: memref<2x1024xf32, #tpu.memory_space<vmem>>, %arg11: memref<2x1024xf32, #tpu.memory_space<vmem>>, %arg12: memref<2x1024xf32, #tpu.memory_space<vmem>>, %arg13: memref<8x128xf32, #tpu.memory_space<vmem>>, %arg14: memref<4xf32, #tpu.memory_space<smem>>) attributes {dimension_semantics = [#tpu.dimension_semantics<parallel>, #tpu.dimension_semantics<arbitrary>], iteration_bounds = array<i64: 1, 1>, scalar_prefetch = 0 : i64, scratch_operands = 1 : i64, tpu.core_type = #tpu.core_type<tc>, window_params = [{transform_indices = @transform_0, window_bounds = array<i64: 8, 1024>}, {transform_indices = @transform_1, window_bounds = array<i64: 8, 1024>}, {transform_indices = @transform_2, window_bounds = array<i64: 2, 1024>}, {transform_indices = @transform_3, window_bounds = array<i64: 2, 1024>}, {transform_indices = @transform_4, window_bounds = array<i64: 2, 1024>}, {transform_indices = @transform_5, window_bounds = array<i64: 2, 1024>}, {transform_indices = @transform_6, window_bounds = array<i64: 2, 1024>}, {transform_indices = @transform_7, window_bounds = array<i64: 2, 1024>}, {transform_indices = @transform_8, window_bounds = array<i64: 2, 1024>}, {transform_indices = @transform_9, window_bounds = array<i64: 2, 1024>}, {transform_indices = @transform_10, window_bounds = array<i64: 2, 1024>}, {transform_indices = @transform_11, window_bounds = array<i64: 8, 128>}]} {
    %c0_i32 = arith.constant 0 : i32
    %0 = arith.cmpi eq, %arg1, %c0_i32 : i32
    %1 = arith.extui %0 : i1 to i32
    %c0_i32_0 = arith.constant 0 : i32
    %2 = arith.cmpi ne, %1, %c0_i32_0 : i32
    scf.if %2 {
      %cst_44 = arith.constant 0.000000e+00 : f32
      %c0_45 = arith.constant 0 : index
      %92 = memref.load %arg14[%c0_45] : memref<4xf32, #tpu.memory_space<smem>>
      memref.store %cst_44, %arg14[%c0_45] : memref<4xf32, #tpu.memory_space<smem>>
      %cst_46 = arith.constant 0.000000e+00 : f32
      %c1_47 = arith.constant 1 : index
      %93 = memref.load %arg14[%c1_47] : memref<4xf32, #tpu.memory_space<smem>>
      memref.store %cst_46, %arg14[%c1_47] : memref<4xf32, #tpu.memory_space<smem>>
      %cst_48 = arith.constant 0.000000e+00 : f32
      %c2_49 = arith.constant 2 : index
      %94 = memref.load %arg14[%c2_49] : memref<4xf32, #tpu.memory_space<smem>>
      memref.store %cst_48, %arg14[%c2_49] : memref<4xf32, #tpu.memory_space<smem>>
      %cst_50 = arith.constant 0.000000e+00 : f32
      %c3_51 = arith.constant 3 : index
      %95 = memref.load %arg14[%c3_51] : memref<4xf32, #tpu.memory_space<smem>>
      memref.store %cst_50, %arg14[%c3_51] : memref<4xf32, #tpu.memory_space<smem>>
    } else {
    }
    %c0 = arith.constant 0 : index
    %c0_1 = arith.constant 0 : index
    %3 = vector.load %arg2[%c0, %c0_1] : memref<8x1024xf32, #tpu.memory_space<vmem>>, vector<8x1024xf32>
    %c0_2 = arith.constant 0 : index
    %c0_3 = arith.constant 0 : index
    %4 = vector.load %arg3[%c0_2, %c0_3] : memref<8x1024xf32, #tpu.memory_space<vmem>>, vector<8x1024xf32>
    %cst = arith.constant 9.99999974E-5 : f32
    %cst_4 = arith.constant 0.999899983 : f32
    %5 = vector.broadcast %cst : f32 to vector<8x1024xf32>
    %6 = arith.maximumf %5, %3 : vector<8x1024xf32>
    %7 = vector.broadcast %cst_4 : f32 to vector<8x1024xf32>
    %8 = arith.minimumf %7, %6 : vector<8x1024xf32>
    %cst_5 = arith.constant 8.000000e-01 : f32
    %9 = vector.broadcast %cst_5 : f32 to vector<8x1024xf32>
    %10 = arith.cmpf oge, %4, %9 : vector<8x1024xf32>
    %11 = arith.extui %10 : vector<8x1024xi1> to vector<8x1024xi32>
    %12 = arith.sitofp %11 : vector<8x1024xi32> to vector<8x1024xf32>
    %cst_6 = arith.constant 1.000000e+00 : f32
    %13 = vector.broadcast %cst_6 : f32 to vector<8x1024xf32>
    %14 = arith.subf %13, %8 : vector<8x1024xf32>
    %15 = arith.select %10, %8, %14 : vector<8x1024xi1>, vector<8x1024xf32>
    %cst_7 = arith.constant 1.000000e+00 : f32
    %16 = vector.broadcast %cst_7 : f32 to vector<8x1024xf32>
    %17 = arith.subf %16, %15 : vector<8x1024xf32>
    %18 = math.sqrt %17 : vector<8x1024xf32>
    %19 = arith.mulf %17, %18 : vector<8x1024xf32>
    %cst_8 = arith.constant 1.000000e+00 : f32
    %20 = vector.broadcast %cst_8 : f32 to vector<8x1024xf32>
    %21 = arith.subf %20, %4 : vector<8x1024xf32>
    %22 = arith.mulf %21, %21 : vector<8x1024xf32>
    %23 = arith.mulf %22, %22 : vector<8x1024xf32>
    %24 = arith.mulf %23, %21 : vector<8x1024xf32>
    %cst_9 = arith.constant 5.000000e-01 : f32
    %25 = vector.broadcast %cst_9 : f32 to vector<8x1024xf32>
    %26 = arith.cmpf ogt, %4, %25 : vector<8x1024xf32>
    %cst_10 = arith.constant 2.000000e+00 : f32
    %cst_11 = arith.constant 1.000000e+00 : f32
    %27 = vector.broadcast %cst_10 : f32 to vector<8x1024xf32>
    %28 = vector.broadcast %cst_11 : f32 to vector<8x1024xf32>
    %29 = arith.select %26, %27, %28 : vector<8x1024xi1>, vector<8x1024xf32>
    %30 = arith.mulf %29, %24 : vector<8x1024xf32>
    %cst_12 = arith.constant 2.000000e+00 : f32
    %31 = vector.broadcast %cst_12 : f32 to vector<8x1024xf32>
    %32 = arith.select %10, %31, %30 : vector<8x1024xi1>, vector<8x1024xf32>
    %33 = math.log %15 : vector<8x1024xf32>
    %34 = arith.mulf %33, %19 : vector<8x1024xf32>
    %35 = arith.mulf %34, %32 : vector<8x1024xf32>
    %c0_13 = arith.constant 0 : index
    %36 = memref.load %arg14[%c0_13] : memref<4xf32, #tpu.memory_space<smem>>
    %37 = vector.shape_cast %12 : vector<8x1024xf32> to vector<1x8x1024xf32>
    %cst_14 = arith.constant dense<0.000000e+00> : vector<1xf32>
    %38 = vector.multi_reduction <add>, %37, %cst_14 [1, 2] : vector<1x8x1024xf32> to vector<1xf32>
    %39 = vector.shape_cast %38 : vector<1xf32> to vector<1x1x1xf32>
    %40 = vector.extract %39[0, 0, 0] : f32 from vector<1x1x1xf32>
    %41 = arith.addf %36, %40 : f32
    %c0_15 = arith.constant 0 : index
    %42 = memref.load %arg14[%c0_15] : memref<4xf32, #tpu.memory_space<smem>>
    memref.store %41, %arg14[%c0_15] : memref<4xf32, #tpu.memory_space<smem>>
    %c1 = arith.constant 1 : index
    %43 = memref.load %arg14[%c1] : memref<4xf32, #tpu.memory_space<smem>>
    %44 = vector.shape_cast %35 : vector<8x1024xf32> to vector<1x8x1024xf32>
    %cst_16 = arith.constant dense<0.000000e+00> : vector<1xf32>
    %45 = vector.multi_reduction <add>, %44, %cst_16 [1, 2] : vector<1x8x1024xf32> to vector<1xf32>
    %46 = vector.shape_cast %45 : vector<1xf32> to vector<1x1x1xf32>
    %47 = vector.extract %46[0, 0, 0] : f32 from vector<1x1x1xf32>
    %48 = arith.addf %43, %47 : f32
    %c1_17 = arith.constant 1 : index
    %49 = memref.load %arg14[%c1_17] : memref<4xf32, #tpu.memory_space<smem>>
    memref.store %48, %arg14[%c1_17] : memref<4xf32, #tpu.memory_space<smem>>
    %c0_18 = arith.constant 0 : index
    %c0_19 = arith.constant 0 : index
    %50 = vector.load %arg12[%c0_18, %c0_19] : memref<2x1024xf32, #tpu.memory_space<vmem>>, vector<2x1024xf32>
    %c0_20 = arith.constant 0 : index
    %c0_21 = arith.constant 0 : index
    %51 = vector.load %arg4[%c0_20, %c0_21] : memref<2x1024xf32, #tpu.memory_space<vmem>>, vector<2x1024xf32>
    %c0_22 = arith.constant 0 : index
    %c0_23 = arith.constant 0 : index
    %52 = vector.load %arg6[%c0_22, %c0_23] : memref<2x1024xf32, #tpu.memory_space<vmem>>, vector<2x1024xf32>
    %53 = arith.subf %51, %52 : vector<2x1024xf32>
    %54 = math.absf %53 : vector<2x1024xf32>
    %c0_24 = arith.constant 0 : index
    %c0_25 = arith.constant 0 : index
    %55 = vector.load %arg5[%c0_24, %c0_25] : memref<2x1024xf32, #tpu.memory_space<vmem>>, vector<2x1024xf32>
    %c0_26 = arith.constant 0 : index
    %c0_27 = arith.constant 0 : index
    %56 = vector.load %arg7[%c0_26, %c0_27] : memref<2x1024xf32, #tpu.memory_space<vmem>>, vector<2x1024xf32>
    %57 = arith.subf %55, %56 : vector<2x1024xf32>
    %58 = math.absf %57 : vector<2x1024xf32>
    %59 = arith.addf %54, %58 : vector<2x1024xf32>
    %c0_28 = arith.constant 0 : index
    %c0_29 = arith.constant 0 : index
    %60 = vector.load %arg8[%c0_28, %c0_29] : memref<2x1024xf32, #tpu.memory_space<vmem>>, vector<2x1024xf32>
    %c0_30 = arith.constant 0 : index
    %c0_31 = arith.constant 0 : index
    %61 = vector.load %arg10[%c0_30, %c0_31] : memref<2x1024xf32, #tpu.memory_space<vmem>>, vector<2x1024xf32>
    %62 = arith.subf %60, %61 : vector<2x1024xf32>
    %63 = math.absf %62 : vector<2x1024xf32>
    %c0_32 = arith.constant 0 : index
    %c0_33 = arith.constant 0 : index
    %64 = vector.load %arg9[%c0_32, %c0_33] : memref<2x1024xf32, #tpu.memory_space<vmem>>, vector<2x1024xf32>
    %c0_34 = arith.constant 0 : index
    %c0_35 = arith.constant 0 : index
    %65 = vector.load %arg11[%c0_34, %c0_35] : memref<2x1024xf32, #tpu.memory_space<vmem>>, vector<2x1024xf32>
    %66 = arith.subf %64, %65 : vector<2x1024xf32>
    %67 = math.absf %66 : vector<2x1024xf32>
    %68 = arith.addf %63, %67 : vector<2x1024xf32>
    %cst_36 = arith.constant 1.000000e+00 : f32
    %69 = vector.broadcast %cst_36 : f32 to vector<2x1024xf32>
    %70 = arith.mulf %69, %59 : vector<2x1024xf32>
    %cst_37 = arith.constant 1.000000e-01 : f32
    %71 = vector.broadcast %cst_37 : f32 to vector<2x1024xf32>
    %72 = arith.mulf %71, %68 : vector<2x1024xf32>
    %73 = arith.addf %70, %72 : vector<2x1024xf32>
    %74 = arith.mulf %73, %50 : vector<2x1024xf32>
    %c2 = arith.constant 2 : index
    %75 = memref.load %arg14[%c2] : memref<4xf32, #tpu.memory_space<smem>>
    %76 = vector.shape_cast %74 : vector<2x1024xf32> to vector<1x2x1024xf32>
    %cst_38 = arith.constant dense<0.000000e+00> : vector<1xf32>
    %77 = vector.multi_reduction <add>, %76, %cst_38 [1, 2] : vector<1x2x1024xf32> to vector<1xf32>
    %78 = vector.shape_cast %77 : vector<1xf32> to vector<1x1x1xf32>
    %79 = vector.extract %78[0, 0, 0] : f32 from vector<1x1x1xf32>
    %80 = arith.addf %75, %79 : f32
    %c2_39 = arith.constant 2 : index
    %81 = memref.load %arg14[%c2_39] : memref<4xf32, #tpu.memory_space<smem>>
    memref.store %80, %arg14[%c2_39] : memref<4xf32, #tpu.memory_space<smem>>
    %c3 = arith.constant 3 : index
    %82 = memref.load %arg14[%c3] : memref<4xf32, #tpu.memory_space<smem>>
    %83 = vector.shape_cast %50 : vector<2x1024xf32> to vector<1x2x1024xf32>
    %cst_40 = arith.constant dense<0.000000e+00> : vector<1xf32>
    %84 = vector.multi_reduction <add>, %83, %cst_40 [1, 2] : vector<1x2x1024xf32> to vector<1xf32>
    %85 = vector.shape_cast %84 : vector<1xf32> to vector<1x1x1xf32>
    %86 = vector.extract %85[0, 0, 0] : f32 from vector<1x1x1xf32>
    %87 = arith.addf %82, %86 : f32
    %c3_41 = arith.constant 3 : index
    %88 = memref.load %arg14[%c3_41] : memref<4xf32, #tpu.memory_space<smem>>
    memref.store %87, %arg14[%c3_41] : memref<4xf32, #tpu.memory_space<smem>>
    %c0_i32_42 = arith.constant 0 : i32
    %89 = arith.cmpi eq, %arg1, %c0_i32_42 : i32
    %90 = arith.extui %89 : i1 to i32
    %c0_i32_43 = arith.constant 0 : i32
    %91 = arith.cmpi ne, %90, %c0_i32_43 : i32
    scf.if %91 {
      %92 = tpu.iota {dimensions = array<i32: 0>} : vector<8x128xi32>
      %93 = tpu.iota {dimensions = array<i32: 1>} : vector<8x128xi32>
      %c0_i32_44 = arith.constant 0 : i32
      %94 = vector.broadcast %c0_i32_44 : i32 to vector<8x128xi32>
      %95 = arith.cmpi eq, %92, %94 : vector<8x128xi32>
      %c0_i32_45 = arith.constant 0 : i32
      %96 = vector.broadcast %c0_i32_45 : i32 to vector<8x128xi32>
      %97 = arith.cmpi eq, %93, %96 : vector<8x128xi32>
      %98 = arith.andi %95, %97 : vector<8x128xi1>
      %c0_46 = arith.constant 0 : index
      %99 = memref.load %arg14[%c0_46] : memref<4xf32, #tpu.memory_space<smem>>
      %cst_47 = arith.constant 0.000000e+00 : f32
      %100 = vector.broadcast %99 : f32 to vector<8x128xf32>
      %101 = vector.broadcast %cst_47 : f32 to vector<8x128xf32>
      %102 = arith.select %98, %100, %101 : vector<8x128xi1>, vector<8x128xf32>
      %c0_i32_48 = arith.constant 0 : i32
      %103 = vector.broadcast %c0_i32_48 : i32 to vector<8x128xi32>
      %104 = arith.cmpi eq, %92, %103 : vector<8x128xi32>
      %c1_i32 = arith.constant 1 : i32
      %105 = vector.broadcast %c1_i32 : i32 to vector<8x128xi32>
      %106 = arith.cmpi eq, %93, %105 : vector<8x128xi32>
      %107 = arith.andi %104, %106 : vector<8x128xi1>
      %c1_49 = arith.constant 1 : index
      %108 = memref.load %arg14[%c1_49] : memref<4xf32, #tpu.memory_space<smem>>
      %109 = vector.broadcast %108 : f32 to vector<8x128xf32>
      %110 = arith.select %107, %109, %102 : vector<8x128xi1>, vector<8x128xf32>
      %c0_i32_50 = arith.constant 0 : i32
      %111 = vector.broadcast %c0_i32_50 : i32 to vector<8x128xi32>
      %112 = arith.cmpi eq, %92, %111 : vector<8x128xi32>
      %c2_i32 = arith.constant 2 : i32
      %113 = vector.broadcast %c2_i32 : i32 to vector<8x128xi32>
      %114 = arith.cmpi eq, %93, %113 : vector<8x128xi32>
      %115 = arith.andi %112, %114 : vector<8x128xi1>
      %c2_51 = arith.constant 2 : index
      %116 = memref.load %arg14[%c2_51] : memref<4xf32, #tpu.memory_space<smem>>
      %117 = vector.broadcast %116 : f32 to vector<8x128xf32>
      %118 = arith.select %115, %117, %110 : vector<8x128xi1>, vector<8x128xf32>
      %c0_i32_52 = arith.constant 0 : i32
      %119 = vector.broadcast %c0_i32_52 : i32 to vector<8x128xi32>
      %120 = arith.cmpi eq, %92, %119 : vector<8x128xi32>
      %c3_i32 = arith.constant 3 : i32
      %121 = vector.broadcast %c3_i32 : i32 to vector<8x128xi32>
      %122 = arith.cmpi eq, %93, %121 : vector<8x128xi32>
      %123 = arith.andi %120, %122 : vector<8x128xi1>
      %c3_53 = arith.constant 3 : index
      %124 = memref.load %arg14[%c3_53] : memref<4xf32, #tpu.memory_space<smem>>
      %125 = vector.broadcast %124 : f32 to vector<8x128xf32>
      %126 = arith.select %123, %125, %118 : vector<8x128xi1>, vector<8x128xf32>
      %c0_54 = arith.constant 0 : index
      %c0_55 = arith.constant 0 : index
      %127 = vector.load %arg13[%c0_54, %c0_55] : memref<8x128xf32, #tpu.memory_space<vmem>>, vector<8x128xf32>
      tpu.vector_store %arg13[%c0_54, %c0_55], %126 {strides = array<i32>} : memref<8x128xf32, #tpu.memory_space<vmem>>, vector<8x128xf32>,
    } else {
    }
    return
  }
  func.func @transform_0(%arg0: i32, %arg1: i32) -> (i32, i32) {
    %c1_i32 = arith.constant 1 : i32
    %0 = arith.muli %arg0, %c1_i32 : i32
    %1 = arith.addi %0, %arg1 : i32
    %c0_i32 = arith.constant 0 : i32
    %c0_i32_0 = arith.constant 0 : i32
    return %c0_i32, %1 : i32, i32
  }
  func.func @transform_1(%arg0: i32, %arg1: i32) -> (i32, i32) {
    %c1_i32 = arith.constant 1 : i32
    %0 = arith.muli %arg0, %c1_i32 : i32
    %1 = arith.addi %0, %arg1 : i32
    %c0_i32 = arith.constant 0 : i32
    %c0_i32_0 = arith.constant 0 : i32
    return %c0_i32, %1 : i32, i32
  }
  func.func @transform_2(%arg0: i32, %arg1: i32) -> (i32, i32) {
    %c1_i32 = arith.constant 1 : i32
    %0 = arith.muli %arg0, %c1_i32 : i32
    %1 = arith.addi %0, %arg1 : i32
    %c0_i32 = arith.constant 0 : i32
    %c0_i32_0 = arith.constant 0 : i32
    return %c0_i32, %1 : i32, i32
  }
  func.func @transform_3(%arg0: i32, %arg1: i32) -> (i32, i32) {
    %c1_i32 = arith.constant 1 : i32
    %0 = arith.muli %arg0, %c1_i32 : i32
    %c1_i32_0 = arith.constant 1 : i32
    %1 = arith.addi %c1_i32_0, %0 : i32
    %2 = arith.addi %1, %arg1 : i32
    %c0_i32 = arith.constant 0 : i32
    %c0_i32_1 = arith.constant 0 : i32
    return %c0_i32, %2 : i32, i32
  }
  func.func @transform_4(%arg0: i32, %arg1: i32) -> (i32, i32) {
    %c1_i32 = arith.constant 1 : i32
    %0 = arith.muli %arg0, %c1_i32 : i32
    %1 = arith.addi %0, %arg1 : i32
    %c0_i32 = arith.constant 0 : i32
    %c0_i32_0 = arith.constant 0 : i32
    return %c0_i32, %1 : i32, i32
  }
  func.func @transform_5(%arg0: i32, %arg1: i32) -> (i32, i32) {
    %c1_i32 = arith.constant 1 : i32
    %0 = arith.muli %arg0, %c1_i32 : i32
    %c1_i32_0 = arith.constant 1 : i32
    %1 = arith.addi %c1_i32_0, %0 : i32
    %2 = arith.addi %1, %arg1 : i32
    %c0_i32 = arith.constant 0 : i32
    %c0_i32_1 = arith.constant 0 : i32
    return %c0_i32, %2 : i32, i32
  }
  func.func @transform_6(%arg0: i32, %arg1: i32) -> (i32, i32) {
    %c1_i32 = arith.constant 1 : i32
    %0 = arith.muli %arg0, %c1_i32 : i32
    %1 = arith.addi %0, %arg1 : i32
    %c0_i32 = arith.constant 0 : i32
    %c0_i32_0 = arith.constant 0 : i32
    return %c0_i32, %1 : i32, i32
  }
  func.func @transform_7(%arg0: i32, %arg1: i32) -> (i32, i32) {
    %c1_i32 = arith.constant 1 : i32
    %0 = arith.muli %arg0, %c1_i32 : i32
    %c1_i32_0 = arith.constant 1 : i32
    %1 = arith.addi %c1_i32_0, %0 : i32
    %2 = arith.addi %1, %arg1 : i32
    %c0_i32 = arith.constant 0 : i32
    %c0_i32_1 = arith.constant 0 : i32
    return %c0_i32, %2 : i32, i32
  }
  func.func @transform_8(%arg0: i32, %arg1: i32) -> (i32, i32) {
    %c1_i32 = arith.constant 1 : i32
    %0 = arith.muli %arg0, %c1_i32 : i32
    %1 = arith.addi %0, %arg1 : i32
    %c0_i32 = arith.constant 0 : i32
    %c0_i32_0 = arith.constant 0 : i32
    return %c0_i32, %1 : i32, i32
  }
  func.func @transform_9(%arg0: i32, %arg1: i32) -> (i32, i32) {
    %c1_i32 = arith.constant 1 : i32
    %0 = arith.muli %arg0, %c1_i32 : i32
    %c1_i32_0 = arith.constant 1 : i32
    %1 = arith.addi %c1_i32_0, %0 : i32
    %2 = arith.addi %1, %arg1 : i32
    %c0_i32 = arith.constant 0 : i32
    %c0_i32_1 = arith.constant 0 : i32
    return %c0_i32, %2 : i32, i32
  }
  func.func @transform_10(%arg0: i32, %arg1: i32) -> (i32, i32) {
    %c1_i32 = arith.constant 1 : i32
    %0 = arith.muli %arg0, %c1_i32 : i32
    %1 = arith.addi %0, %arg1 : i32
    %c0_i32 = arith.constant 0 : i32
    %c0_i32_0 = arith.constant 0 : i32
    return %c0_i32, %1 : i32, i32
  }
  func.func @transform_11(%arg0: i32, %arg1: i32) -> (i32, i32) {
    %c0_i32 = arith.constant 0 : i32
    %c0_i32_0 = arith.constant 0 : i32
    return %arg0, %c0_i32 : i32, i32
  }
}

</mosaic_0001>

<llo_original>
// kernel: tpu_custom_call.1
$region0: #{tpu_custom_call.1}
  #allocation0 [shape = 'u32[]', space=smem, size = 0x4, offset = 0x4, fixed_abs, tag = 'smem constant byte address 0x4 - core index']
  #allocation1 [shape = 'u32[144,128]{1,0:T(1,128)}', space=vmem, size = 0x12000, scoped, tag = 'internal scratch']
  #allocation2 [shape = 'f32[4]{0:T(128)}', space=smem, size = 0x200, scoped, tag = 'scratch operand']
  %s0 = inlined_call_operand.hbm [shape: f32[8,1024], index: 0, kind: input, shape index: {}]
  %s1 = inlined_call_operand.hbm [shape: f32[8,1024], index: 1, kind: input, shape index: {}]
  %s2 = inlined_call_operand.hbm [shape: f32[2,2048], index: 2, kind: input, shape index: {}]
  %s3 = inlined_call_operand.hbm [shape: f32[2,2048], index: 3, kind: input, shape index: {}]
  %s4 = inlined_call_operand.hbm [shape: f32[2,2048], index: 4, kind: input, shape index: {}]
  %s5 = inlined_call_operand.hbm [shape: f32[2,2048], index: 5, kind: input, shape index: {}]
  %s6 = inlined_call_operand.hbm [shape: f32[2,2048], index: 6, kind: input, shape index: {}]
  %s7 = inlined_call_operand.hbm [shape: f32[2,2048], index: 7, kind: input, shape index: {}]
  %s8 = inlined_call_operand.hbm [shape: f32[2,2048], index: 8, kind: input, shape index: {}]
  %s9 = inlined_call_operand.vmem [shape: f32[2,2048], index: 9, kind: input, shape index: {}]
  %s10 = inlined_call_operand.hbm [shape: f32[2,1024], index: 10, kind: input, shape index: {}]
  %s11 = inlined_call_operand.hbm [shape: f32[8,128], index: 11, kind: output, shape index: {}]
  %s12 = sld [smem:[#allocation0]]
  $region102: #{tpu_custom_call.1} parent=0
    _
  %s14 = ssub.s32 1, %s12
  %s15 = scalar_select 0, %s14, %s12
  $region1: #{tpu_custom_call.1} parent=0
    #allocation3 [shape = 'u8[32768]{0}', space=vmem, size = 0x8000, scoped, tag = 'input window, operand 0, single buffered']
    #allocation4 [shape = 's32[1]{0}', space=sflag, size = 0x4, scoped, tag = 'scoped memory for tpu_custom_call.1']
    #allocation5 [shape = 's32[1]{0}', space=sflag, size = 0x4, scoped, tag = 'scoped memory for tpu_custom_call.1']
    #allocation6 [shape = 'u8[32768]{0}', space=vmem, size = 0x8000, scoped, tag = 'input window, operand 1, single buffered']
    #allocation7 [shape = 's32[1]{0}', space=sflag, size = 0x4, scoped, tag = 'scoped memory for tpu_custom_call.1']
    #allocation8 [shape = 'u8[8192]{0}', space=vmem, size = 0x2000, scoped, tag = 'input window, operand 2, single buffered']
    #allocation9 [shape = 'u8[8192]{0}', space=vmem, size = 0x2000, scoped, tag = 'input window, operand 3, single buffered']
    #allocation10 [shape = 's32[1]{0}', space=sflag, size = 0x4, scoped, tag = 'scoped memory for tpu_custom_call.1']
    #allocation11 [shape = 'u8[8192]{0}', space=vmem, size = 0x2000, scoped, tag = 'input window, operand 4, single buffered']
    #allocation12 [shape = 'u8[8192]{0}', space=vmem, size = 0x2000, scoped, tag = 'input window, operand 5, single buffered']
    #allocation13 [shape = 's32[1]{0}', space=sflag, size = 0x4, scoped, tag = 'scoped memory for tpu_custom_call.1']
    #allocation14 [shape = 'u8[8192]{0}', space=vmem, size = 0x2000, scoped, tag = 'input window, operand 6, single buffered']
    #allocation15 [shape = 'u8[8192]{0}', space=vmem, size = 0x2000, scoped, tag = 'input window, operand 7, single buffered']
    #allocation16 [shape = 's32[1]{0}', space=sflag, size = 0x4, scoped, tag = 'scoped memory for tpu_custom_call.1']
    #allocation17 [shape = 'u8[8192]{0}', space=vmem, size = 0x2000, scoped, tag = 'input window, operand 8, single buffered']
    #allocation18 [shape = 'u8[8192]{0}', space=vmem, size = 0x2000, scoped, tag = 'input window, operand 10, single buffered']
    #allocation19 [shape = 's32[1]{0}', space=sflag, size = 0x4, scoped, tag = 'scoped memory for tpu_custom_call.1']
    #allocation20 [shape = 'u8[4096]{0}', space=vmem, size = 0x1000, scoped, tag = 'output window, operand 0, single buffered']
    %16 = vsyncpa [#allocation4], 0
    %17 = vsyncpa [#allocation7], 0
    %18 = vsyncpa [#allocation10], 0
    %19 = vsyncpa [#allocation13], 0
    %20 = vsyncpa [#allocation16], 0
    %21 = vsyncpa [#allocation19], 0
    %22 = vsyncpa [#allocation5], 0
    // Predicated region
    $region2: #{tpu_custom_call.1} parent=1 // pred_check
      _
    $region3: #{tpu_custom_call.1} parent=1 // pred_check_branch
      %24 = sbr.rel (0) target = $region5
    $region4: #{tpu_custom_call.1} parent=1 // pred_region
      %s25 = sadd.s32 0, 0
      %s26 = smul.u32 8, %s25
      %s28 = ssub.s32 1024, 1024
      %29 = vsyncadd [#allocation4], %s28
      %s30 = smul.addr %s26, 128
      %s31 = scalar_lea.hbm %s0, %s30
      %s33 = sshll.u32 [#allocation3], 4
      %s34 = int_to_ptr.vmem [resolvable:$true] %s33
      %36 = dma.hbm_to_vmem [thread:$0]  %s31, 1024, %s34, [#allocation4]
    $region5: #{tpu_custom_call.1} parent=1 // pred_fallthru
      _
    // Predicated region
    $region6: #{tpu_custom_call.1} parent=1 // pred_check
      _
    $region7: #{tpu_custom_call.1} parent=1 // pred_check_branch
      %38 = sbr.rel (0) target = $region9
    $region8: #{tpu_custom_call.1} parent=1 // pred_region
      %s39 = sadd.s32 0, 0
      %s40 = smul.u32 8, %s39
      %s42 = ssub.s32 1024, 1024
      %43 = vsyncadd [#allocation7], %s42
      %s44 = smul.addr %s40, 128
      %s45 = scalar_lea.hbm %s1, %s44
      %s47 = sshll.u32 [#allocation6], 4
      %s48 = int_to_ptr.vmem [resolvable:$true] %s47
      %50 = dma.hbm_to_vmem [thread:$0]  %s45, 1024, %s48, [#allocation7]
    $region9: #{tpu_custom_call.1} parent=1 // pred_fallthru
      _
    // Predicated region
    $region10: #{tpu_custom_call.1} parent=1 // pred_check
      _
    $region11: #{tpu_custom_call.1} parent=1 // pred_check_branch
      %52 = sbr.rel (0) target = $region13
    $region12: #{tpu_custom_call.1} parent=1 // pred_region
      %s53 = sadd.s32 0, 0
      %s54 = smul.u32 8, %s53
      %s56 = ssub.s32 256, 256
      %57 = vsyncadd [#allocation7], %s56
      %s58 = smul.addr %s54, 32
      %s59 = scalar_lea.hbm %s2, %s58
      %s61 = sshll.u32 [#allocation8], 4
      %s62 = int_to_ptr.vmem [resolvable:$true] %s61
      %64 = dma.hbm_to_vmem [thread:$0]  %s59, 256, %s62, [#allocation7]
    $region13: #{tpu_custom_call.1} parent=1 // pred_fallthru
      _
    // Predicated region
    $region14: #{tpu_custom_call.1} parent=1 // pred_check
      _
    $region15: #{tpu_custom_call.1} parent=1 // pred_check_branch
      %66 = sbr.rel (0) target = $region17
    $region16: #{tpu_custom_call.1} parent=1 // pred_region
      %s67 = sadd.s32 0, 1
      %s68 = sadd.s32 %s67, 0
      %s69 = smul.u32 8, %s68
      %s71 = ssub.s32 256, 256
      %72 = vsyncadd [#allocation10], %s71
      %s73 = smul.addr %s69, 32
      %s74 = scalar_lea.hbm %s3, %s73
      %s76 = sshll.u32 [#allocation9], 4
      %s77 = int_to_ptr.vmem [resolvable:$true] %s76
      %79 = dma.hbm_to_vmem [thread:$0]  %s74, 256, %s77, [#allocation10]
    $region17: #{tpu_custom_call.1} parent=1 // pred_fallthru
      _
    // Predicated region
    $region18: #{tpu_custom_call.1} parent=1 // pred_check
      _
    $region19: #{tpu_custom_call.1} parent=1 // pred_check_branch
      %81 = sbr.rel (0) target = $region21
    $region20: #{tpu_custom_call.1} parent=1 // pred_region
      %s82 = sadd.s32 0, 0
      %s83 = smul.u32 8, %s82
      %s85 = ssub.s32 256, 256
      %86 = vsyncadd [#allocation10], %s85
      %s87 = smul.addr %s83, 32
      %s88 = scalar_lea.hbm %s4, %s87
      %s90 = sshll.u32 [#allocation11], 4
      %s91 = int_to_ptr.vmem [resolvable:$true] %s90
      %93 = dma.hbm_to_vmem [thread:$0]  %s88, 256, %s91, [#allocation10]
    $region21: #{tpu_custom_call.1} parent=1 // pred_fallthru
      _
    // Predicated region
    $region22: #{tpu_custom_call.1} parent=1 // pred_check
      _
    $region23: #{tpu_custom_call.1} parent=1 // pred_check_branch
      %95 = sbr.rel (0) target = $region25
    $region24: #{tpu_custom_call.1} parent=1 // pred_region
      %s96 = sadd.s32 0, 1
      %s97 = sadd.s32 %s96, 0
      %s98 = smul.u32 8, %s97
      %s100 = ssub.s32 256, 256
      %101 = vsyncadd [#allocation13], %s100
      %s102 = smul.addr %s98, 32
      %s103 = scalar_lea.hbm %s5, %s102
      %s105 = sshll.u32 [#allocation12], 4
      %s106 = int_to_ptr.vmem [resolvable:$true] %s105
      %108 = dma.hbm_to_vmem [thread:$0]  %s103, 256, %s106, [#allocation13]
    $region25: #{tpu_custom_call.1} parent=1 // pred_fallthru
      _
    // Predicated region
    $region26: #{tpu_custom_call.1} parent=1 // pred_check
      _
    $region27: #{tpu_custom_call.1} parent=1 // pred_check_branch
      %110 = sbr.rel (0) target = $region29
    $region28: #{tpu_custom_call.1} parent=1 // pred_region
      %s111 = sadd.s32 0, 0
      %s112 = smul.u32 8, %s111
      %s114 = ssub.s32 256, 256
      %115 = vsyncadd [#allocation13], %s114
      %s116 = smul.addr %s112, 32
      %s117 = scalar_lea.hbm %s6, %s116
      %s119 = sshll.u32 [#allocation14], 4
      %s120 = int_to_ptr.vmem [resolvable:$true] %s119
      %122 = dma.hbm_to_vmem [thread:$0]  %s117, 256, %s120, [#allocation13]
    $region29: #{tpu_custom_call.1} parent=1 // pred_fallthru
      _
    // Predicated region
    $region30: #{tpu_custom_call.1} parent=1 // pred_check
      _
    $region31: #{tpu_custom_call.1} parent=1 // pred_check_branch
      %124 = sbr.rel (0) target = $region33
    $region32: #{tpu_custom_call.1} parent=1 // pred_region
      %s125 = sadd.s32 0, 1
      %s126 = sadd.s32 %s125, 0
      %s127 = smul.u32 8, %s126
      %s129 = ssub.s32 256, 256
      %130 = vsyncadd [#allocation16], %s129
      %s131 = smul.addr %s127, 32
      %s132 = scalar_lea.hbm %s7, %s131
      %s134 = sshll.u32 [#allocation15], 4
      %s135 = int_to_ptr.vmem [resolvable:$true] %s134
      %137 = dma.hbm_to_vmem [thread:$0]  %s132, 256, %s135, [#allocation16]
    $region33: #{tpu_custom_call.1} parent=1 // pred_fallthru
      _
    // Predicated region
    $region34: #{tpu_custom_call.1} parent=1 // pred_check
      _
    $region35: #{tpu_custom_call.1} parent=1 // pred_check_branch
      %139 = sbr.rel (0) target = $region37
    $region36: #{tpu_custom_call.1} parent=1 // pred_region
      %s140 = sadd.s32 0, 0
      %s141 = smul.u32 8, %s140
      %s143 = ssub.s32 256, 256
      %144 = vsyncadd [#allocation16], %s143
      %s145 = smul.addr %s141, 32
      %s146 = scalar_lea.hbm %s8, %s145
      %s148 = sshll.u32 [#allocation17], 4
      %s149 = int_to_ptr.vmem [resolvable:$true] %s148
      %151 = dma.hbm_to_vmem [thread:$0]  %s146, 256, %s149, [#allocation16]
    $region37: #{tpu_custom_call.1} parent=1 // pred_fallthru
      _
    // Predicated region
    $region38: #{tpu_custom_call.1} parent=1 // pred_check
      _
    $region39: #{tpu_custom_call.1} parent=1 // pred_check_branch
      %153 = sbr.rel (0) target = $region41
    $region40: #{tpu_custom_call.1} parent=1 // pred_region
      %s154 = sadd.s32 0, 1
      %s155 = sadd.s32 %s154, 0
      %s156 = smul.u32 8, %s155
      %p157 = scmp.lt.s32.totalorder %s156, 15
      %s158 = scalar_select %p157, %s156, 15
      %s159 = smul.addr %s158, 2
      %s160 = scalar_lea.vmem %s9, %s159
      %s161 = sadd.s32 0, 1
      %s162 = sadd.s32 %s161, 0
      %s163 = smul.u32 8, %s162
    $region41: #{tpu_custom_call.1} parent=1 // pred_fallthru
      _
    // Predicated region
    $region42: #{tpu_custom_call.1} parent=1 // pred_check
      _
    $region43: #{tpu_custom_call.1} parent=1 // pred_check_branch
      %165 = sbr.rel (0) target = $region45
    $region44: #{tpu_custom_call.1} parent=1 // pred_region
      %s166 = sadd.s32 0, 0
      %s167 = smul.u32 8, %s166
      %s169 = ssub.s32 256, 256
      %170 = vsyncadd [#allocation19], %s169
      %s171 = smul.addr %s167, 32
      %s172 = scalar_lea.hbm %s10, %s171
      %s174 = sshll.u32 [#allocation18], 4
      %s175 = int_to_ptr.vmem [resolvable:$true] %s174
      %177 = dma.hbm_to_vmem [thread:$0]  %s172, 256, %s175, [#allocation19]
    $region45: #{tpu_custom_call.1} parent=1 // pred_fallthru
      _
    // Predicated region
    $region46: #{tpu_custom_call.1} parent=1 // pred_check
      _
    $region47: #{tpu_custom_call.1} parent=1 // pred_check_branch
      %179 = sbr.rel (0) target = $region49
    $region48: #{tpu_custom_call.1} parent=1 // pred_region
      %180 = dma.done [#allocation4], 1024
    $region49: #{tpu_custom_call.1} parent=1 // pred_fallthru
      _
    // Predicated region
    $region50: #{tpu_custom_call.1} parent=1 // pred_check
      _
    $region51: #{tpu_custom_call.1} parent=1 // pred_check_branch
      %182 = sbr.rel (0) target = $region53
    $region52: #{tpu_custom_call.1} parent=1 // pred_region
      %183 = dma.done [#allocation7], 1024
    $region53: #{tpu_custom_call.1} parent=1 // pred_fallthru
      _
    // Predicated region
    $region54: #{tpu_custom_call.1} parent=1 // pred_check
      _
    $region55: #{tpu_custom_call.1} parent=1 // pred_check_branch
      %185 = sbr.rel (0) target = $region57
    $region56: #{tpu_custom_call.1} parent=1 // pred_region
      %186 = dma.done [#allocation7], 256
    $region57: #{tpu_custom_call.1} parent=1 // pred_fallthru
      _
    // Predicated region
    $region58: #{tpu_custom_call.1} parent=1 // pred_check
      _
    $region59: #{tpu_custom_call.1} parent=1 // pred_check_branch
      %188 = sbr.rel (0) target = $region61
    $region60: #{tpu_custom_call.1} parent=1 // pred_region
      %189 = dma.done [#allocation10], 256
    $region61: #{tpu_custom_call.1} parent=1 // pred_fallthru
      _
    // Predicated region
    $region62: #{tpu_custom_call.1} parent=1 // pred_check
      _
    $region63: #{tpu_custom_call.1} parent=1 // pred_check_branch
      %191 = sbr.rel (0) target = $region65
    $region64: #{tpu_custom_call.1} parent=1 // pred_region
      %192 = dma.done [#allocation10], 256
    $region65: #{tpu_custom_call.1} parent=1 // pred_fallthru
      _
    // Predicated region
    $region66: #{tpu_custom_call.1} parent=1 // pred_check
      _
    $region67: #{tpu_custom_call.1} parent=1 // pred_check_branch
      %194 = sbr.rel (0) target = $region69
    $region68: #{tpu_custom_call.1} parent=1 // pred_region
      %195 = dma.done [#allocation13], 256
    $region69: #{tpu_custom_call.1} parent=1 // pred_fallthru
      _
    // Predicated region
    $region70: #{tpu_custom_call.1} parent=1 // pred_check
      _
    $region71: #{tpu_custom_call.1} parent=1 // pred_check_branch
      %197 = sbr.rel (0) target = $region73
    $region72: #{tpu_custom_call.1} parent=1 // pred_region
      %198 = dma.done [#allocation13], 256
    $region73: #{tpu_custom_call.1} parent=1 // pred_fallthru
      _
    // Predicated region
    $region74: #{tpu_custom_call.1} parent=1 // pred_check
      _
    $region75: #{tpu_custom_call.1} parent=1 // pred_check_branch
      %200 = sbr.rel (0) target = $region77
    $region76: #{tpu_custom_call.1} parent=1 // pred_region
      %201 = dma.done [#allocation16], 256
    $region77: #{tpu_custom_call.1} parent=1 // pred_fallthru
      _
    // Predicated region
    $region78: #{tpu_custom_call.1} parent=1 // pred_check
      _
    $region79: #{tpu_custom_call.1} parent=1 // pred_check_branch
      %203 = sbr.rel (0) target = $region81
    $region80: #{tpu_custom_call.1} parent=1 // pred_region
      %204 = dma.done [#allocation16], 256
    $region81: #{tpu_custom_call.1} parent=1 // pred_fallthru
      _
    // Predicated region
    $region82: #{tpu_custom_call.1} parent=1 // pred_check
      _
    $region83: #{tpu_custom_call.1} parent=1 // pred_check_branch
      %206 = sbr.rel (0) target = $region85
    $region84: #{tpu_custom_call.1} parent=1 // pred_region
      %207 = dma.done [#allocation19], 256
    $region85: #{tpu_custom_call.1} parent=1 // pred_fallthru
      _
    %s208 = sadd.s32 0, 1
    %s209 = sadd.s32 %s208, 0
    %s210 = smul.u32 8, %s209
    %p211 = scmp.lt.s32.totalorder %s210, 15
    %s212 = scalar_select %p211, %s210, 15
    %s213 = smul.addr %s212, 2
    %s214 = scalar_lea.vmem %s9, %s213
    %s215 = sadd.s32 0, 0
    %s216 = smul.u32 8, %s215
    %s217 = sadd.s32 0, 0
    %s218 = smul.u32 8, %s217
    %s219 = sadd.s32 0, 0
    %s220 = smul.u32 8, %s219
    %s221 = sadd.s32 0, 1
    %s222 = sadd.s32 %s221, 0
    %s223 = smul.u32 8, %s222
    %s224 = sadd.s32 0, 0
    %s225 = smul.u32 8, %s224
    %s226 = sadd.s32 0, 1
    %s227 = sadd.s32 %s226, 0
    %s228 = smul.u32 8, %s227
    %s229 = sadd.s32 0, 0
    %s230 = smul.u32 8, %s229
    %s231 = sadd.s32 0, 1
    %s232 = sadd.s32 %s231, 0
    %s233 = smul.u32 8, %s232
    %s234 = sadd.s32 0, 0
    %s235 = smul.u32 8, %s234
    %s236 = sadd.s32 0, 1
    %s237 = sadd.s32 %s236, 0
    %s238 = smul.u32 8, %s237
    %p239 = scmp.lt.s32.totalorder %s238, 15
    %s240 = scalar_select %p239, %s238, 15
    %s241 = smul.addr %s240, 2
    %s242 = scalar_lea.vmem %s9, %s241
    %s243 = sadd.s32 0, 1
    %s244 = sadd.s32 %s243, 0
    %s245 = smul.u32 8, %s244
    %s246 = sadd.s32 0, 0
    %s247 = smul.u32 8, %s246
    %p248 = scmp.eq.s32.totalorder 0, 0
    // Predicated region
    $region86: #{tpu_custom_call.1} parent=1 // pred_check
      %p249 = pneg %p248
    $region87: #{tpu_custom_call.1} parent=1 // pred_check_branch
      %251 = sbr.rel (%p249) target = $region89
    $region88: #{tpu_custom_call.1} parent=1 // pred_region
      %s252 = scalar_lea.smem [#allocation2], 0
      %253 = sst [smem:[%s252]] 0.0
      %s254 = scalar_lea.smem [#allocation2], 1
      %255 = sst [smem:[%s254]] 0.0
      %s256 = scalar_lea.smem [#allocation2], 2
      %257 = sst [smem:[%s256]] 0.0
      %s258 = scalar_lea.smem [#allocation2], 3
      %259 = sst [smem:[%s258]] 0.0
    $region89: #{tpu_custom_call.1} parent=1 // pred_fallthru
      _
    %v260 = vld [vmem:[#allocation3] sm:$0xff]
    %v261 = vld [vmem:[#allocation3 + $0x8] sm:$0xff]
    %v262 = vld [vmem:[#allocation3 + $0x10] sm:$0xff]
    %v263 = vld [vmem:[#allocation3 + $0x18] sm:$0xff]
    %v264 = vld [vmem:[#allocation3 + $0x20] sm:$0xff]
    %v265 = vld [vmem:[#allocation3 + $0x28] sm:$0xff]
    %v266 = vld [vmem:[#allocation3 + $0x30] sm:$0xff]
    %v267 = vld [vmem:[#allocation3 + $0x38] sm:$0xff]
    %v268 = vld [vmem:[#allocation6] sm:$0xff]
    %v269 = vld [vmem:[#allocation6 + $0x8] sm:$0xff]
    %v270 = vld [vmem:[#allocation6 + $0x10] sm:$0xff]
    %v271 = vld [vmem:[#allocation6 + $0x18] sm:$0xff]
    %v272 = vld [vmem:[#allocation6 + $0x20] sm:$0xff]
    %v273 = vld [vmem:[#allocation6 + $0x28] sm:$0xff]
    %v274 = vld [vmem:[#allocation6 + $0x30] sm:$0xff]
    %v275 = vld [vmem:[#allocation6 + $0x38] sm:$0xff]
    %v276 = vmax.f32 %v260, 0.0001
    %v277 = vmax.f32 %v261, 0.0001
    %v278 = vmax.f32 %v262, 0.0001
    %v279 = vmax.f32 %v263, 0.0001
    %v280 = vmax.f32 %v264, 0.0001
    %v281 = vmax.f32 %v265, 0.0001
    %v282 = vmax.f32 %v266, 0.0001
    %v283 = vmax.f32 %v267, 0.0001
    %v284 = vmin.f32 %v276, 0.9999
    %v285 = vmin.f32 %v277, 0.9999
    %v286 = vmin.f32 %v278, 0.9999
    %v287 = vmin.f32 %v279, 0.9999
    %v288 = vmin.f32 %v280, 0.9999
    %v289 = vmin.f32 %v281, 0.9999
    %v290 = vmin.f32 %v282, 0.9999
    %v291 = vmin.f32 %v283, 0.9999
    %vm292 = vcmp.ge.f32.partialorder %v268, 0.8
    %vm293 = vcmp.ge.f32.partialorder %v269, 0.8
    %vm294 = vcmp.ge.f32.partialorder %v270, 0.8
    %vm295 = vcmp.ge.f32.partialorder %v271, 0.8
    %vm296 = vcmp.ge.f32.partialorder %v272, 0.8
    %vm297 = vcmp.ge.f32.partialorder %v273, 0.8
    %vm298 = vcmp.ge.f32.partialorder %v274, 0.8
    %vm299 = vcmp.ge.f32.partialorder %v275, 0.8
    %v300 = vsel %vm292, 1, 0
    %v301 = vsel %vm293, 1, 0
    %v302 = vsel %vm294, 1, 0
    %v303 = vsel %vm295, 1, 0
    %v304 = vsel %vm296, 1, 0
    %v305 = vsel %vm297, 1, 0
    %v306 = vsel %vm298, 1, 0
    %v307 = vsel %vm299, 1, 0
    %v308 = vcvt.s32.f32 %v300
    %v309 = vcvt.s32.f32 %v301
    %v310 = vcvt.s32.f32 %v302
    %v311 = vcvt.s32.f32 %v303
    %v312 = vcvt.s32.f32 %v304
    %v313 = vcvt.s32.f32 %v305
    %v314 = vcvt.s32.f32 %v306
    %v315 = vcvt.s32.f32 %v307
    %v316 = vsub.f32 1.0, %v284
    %v317 = vsub.f32 1.0, %v285
    %v318 = vsub.f32 1.0, %v286
    %v319 = vsub.f32 1.0, %v287
    %v320 = vsub.f32 1.0, %v288
    %v321 = vsub.f32 1.0, %v289
    %v322 = vsub.f32 1.0, %v290
    %v323 = vsub.f32 1.0, %v291
    %v324 = vsel %vm292, %v284, %v316
    %v325 = vsel %vm293, %v285, %v317
    %v326 = vsel %vm294, %v286, %v318
    %v327 = vsel %vm295, %v287, %v319
    %v328 = vsel %vm296, %v288, %v320
    %v329 = vsel %vm297, %v289, %v321
    %v330 = vsel %vm298, %v290, %v322
    %v331 = vsel %vm299, %v291, %v323
    %v332 = vsub.f32 1.0, %v324
    %v333 = vsub.f32 1.0, %v325
    %v334 = vsub.f32 1.0, %v326
    %v335 = vsub.f32 1.0, %v327
    %v336 = vsub.f32 1.0, %v328
    %v337 = vsub.f32 1.0, %v329
    %v338 = vsub.f32 1.0, %v330
    %v339 = vsub.f32 1.0, %v331
    %v340 = vrsqrt.pop %v332
    %v341 = vmul.f32 %v332, %v340
    %vm342 = vcmp.eq.f32.partialorder %v332, inf
    %v343 = vsel %vm342, %v332, %v341
    %vm344 = vcmp.eq.f32.partialorder %v332, 0.0
    %v345 = vand.u32 %v332, 2147483648
    %v346 = vsel %vm344, %v345, %v343
    %v347 = vrsqrt.pop %v333
    %v348 = vmul.f32 %v333, %v347
    %vm349 = vcmp.eq.f32.partialorder %v333, inf
    %v350 = vsel %vm349, %v333, %v348
    %vm351 = vcmp.eq.f32.partialorder %v333, 0.0
    %v352 = vand.u32 %v333, 2147483648
    %v353 = vsel %vm351, %v352, %v350
    %v354 = vrsqrt.pop %v334
    %v355 = vmul.f32 %v334, %v354
    %vm356 = vcmp.eq.f32.partialorder %v334, inf
    %v357 = vsel %vm356, %v334, %v355
    %vm358 = vcmp.eq.f32.partialorder %v334, 0.0
    %v359 = vand.u32 %v334, 2147483648
    %v360 = vsel %vm358, %v359, %v357
    %v361 = vrsqrt.pop %v335
    %v362 = vmul.f32 %v335, %v361
    %vm363 = vcmp.eq.f32.partialorder %v335, inf
    %v364 = vsel %vm363, %v335, %v362
    %vm365 = vcmp.eq.f32.partialorder %v335, 0.0
    %v366 = vand.u32 %v335, 2147483648
    %v367 = vsel %vm365, %v366, %v364
    %v368 = vrsqrt.pop %v336
    %v369 = vmul.f32 %v336, %v368
    %vm370 = vcmp.eq.f32.partialorder %v336, inf
    %v371 = vsel %vm370, %v336, %v369
    %vm372 = vcmp.eq.f32.partialorder %v336, 0.0
    %v373 = vand.u32 %v336, 2147483648
    %v374 = vsel %vm372, %v373, %v371
    %v375 = vrsqrt.pop %v337
    %v376 = vmul.f32 %v337, %v375
    %vm377 = vcmp.eq.f32.partialorder %v337, inf
    %v378 = vsel %vm377, %v337, %v376
    %vm379 = vcmp.eq.f32.partialorder %v337, 0.0
    %v380 = vand.u32 %v337, 2147483648
    %v381 = vsel %vm379, %v380, %v378
    %v382 = vrsqrt.pop %v338
    %v383 = vmul.f32 %v338, %v382
    %vm384 = vcmp.eq.f32.partialorder %v338, inf
    %v385 = vsel %vm384, %v338, %v383
    %vm386 = vcmp.eq.f32.partialorder %v338, 0.0
    %v387 = vand.u32 %v338, 2147483648
    %v388 = vsel %vm386, %v387, %v385
    %v389 = vrsqrt.pop %v339
    %v390 = vmul.f32 %v339, %v389
    %vm391 = vcmp.eq.f32.partialorder %v339, inf
    %v392 = vsel %vm391, %v339, %v390
    %vm393 = vcmp.eq.f32.partialorder %v339, 0.0
    %v394 = vand.u32 %v339, 2147483648
    %v395 = vsel %vm393, %v394, %v392
    %v396 = vmul.f32 %v332, %v346
    %v397 = vmul.f32 %v333, %v353
    %v398 = vmul.f32 %v334, %v360
    %v399 = vmul.f32 %v335, %v367
    %v400 = vmul.f32 %v336, %v374
    %v401 = vmul.f32 %v337, %v381
    %v402 = vmul.f32 %v338, %v388
    %v403 = vmul.f32 %v339, %v395
    %v404 = vsub.f32 1.0, %v268
    %v405 = vsub.f32 1.0, %v269
    %v406 = vsub.f32 1.0, %v270
    %v407 = vsub.f32 1.0, %v271
    %v408 = vsub.f32 1.0, %v272
    %v409 = vsub.f32 1.0, %v273
    %v410 = vsub.f32 1.0, %v274
    %v411 = vsub.f32 1.0, %v275
    %v412 = vmul.f32 %v404, %v404
    %v413 = vmul.f32 %v405, %v405
    %v414 = vmul.f32 %v406, %v406
    %v415 = vmul.f32 %v407, %v407
    %v416 = vmul.f32 %v408, %v408
    %v417 = vmul.f32 %v409, %v409
    %v418 = vmul.f32 %v410, %v410
    %v419 = vmul.f32 %v411, %v411
    %v420 = vmul.f32 %v412, %v412
    %v421 = vmul.f32 %v413, %v413
    %v422 = vmul.f32 %v414, %v414
    %v423 = vmul.f32 %v415, %v415
    %v424 = vmul.f32 %v416, %v416
    %v425 = vmul.f32 %v417, %v417
    %v426 = vmul.f32 %v418, %v418
    %v427 = vmul.f32 %v419, %v419
    %v428 = vmul.f32 %v420, %v404
    %v429 = vmul.f32 %v421, %v405
    %v430 = vmul.f32 %v422, %v406
    %v431 = vmul.f32 %v423, %v407
    %v432 = vmul.f32 %v424, %v408
    %v433 = vmul.f32 %v425, %v409
    %v434 = vmul.f32 %v426, %v410
    %v435 = vmul.f32 %v427, %v411
    %vm436 = vcmp.gt.f32.partialorder %v268, 0.5
    %vm437 = vcmp.gt.f32.partialorder %v269, 0.5
    %vm438 = vcmp.gt.f32.partialorder %v270, 0.5
    %vm439 = vcmp.gt.f32.partialorder %v271, 0.5
    %vm440 = vcmp.gt.f32.partialorder %v272, 0.5
    %vm441 = vcmp.gt.f32.partialorder %v273, 0.5
    %vm442 = vcmp.gt.f32.partialorder %v274, 0.5
    %vm443 = vcmp.gt.f32.partialorder %v275, 0.5
    %v444 = vsel %vm436, 2.0, 1.0
    %v445 = vsel %vm437, 2.0, 1.0
    %v446 = vsel %vm438, 2.0, 1.0
    %v447 = vsel %vm439, 2.0, 1.0
    %v448 = vsel %vm440, 2.0, 1.0
    %v449 = vsel %vm441, 2.0, 1.0
    %v450 = vsel %vm442, 2.0, 1.0
    %v451 = vsel %vm443, 2.0, 1.0
    %v452 = vmul.f32 %v444, %v428
    %v453 = vmul.f32 %v445, %v429
    %v454 = vmul.f32 %v446, %v430
    %v455 = vmul.f32 %v447, %v431
    %v456 = vmul.f32 %v448, %v432
    %v457 = vmul.f32 %v449, %v433
    %v458 = vmul.f32 %v450, %v434
    %v459 = vmul.f32 %v451, %v435
    %v460 = vsel %vm292, 2.0, %v452
    %v461 = vsel %vm293, 2.0, %v453
    %v462 = vsel %vm294, 2.0, %v454
    %v463 = vsel %vm295, 2.0, %v455
    %v464 = vsel %vm296, 2.0, %v456
    %v465 = vsel %vm297, 2.0, %v457
    %v466 = vsel %vm298, 2.0, %v458
    %v467 = vsel %vm299, 2.0, %v459
    %v468 = vlog2.pop %v324
    %v469 = vmul.f32 %v468, 0.6931472
    %v470 = vlog2.pop %v325
    %v471 = vmul.f32 %v470, 0.6931472
    %v472 = vlog2.pop %v326
    %v473 = vmul.f32 %v472, 0.6931472
    %v474 = vlog2.pop %v327
    %v475 = vmul.f32 %v474, 0.6931472
    %v476 = vlog2.pop %v328
    %v477 = vmul.f32 %v476, 0.6931472
    %v478 = vlog2.pop %v329
    %v479 = vmul.f32 %v478, 0.6931472
    %v480 = vlog2.pop %v330
    %v481 = vmul.f32 %v480, 0.6931472
    %v482 = vlog2.pop %v331
    %v483 = vmul.f32 %v482, 0.6931472
    %v484 = vmul.f32 %v469, %v396
    %v485 = vmul.f32 %v471, %v397
    %v486 = vmul.f32 %v473, %v398
    %v487 = vmul.f32 %v475, %v399
    %v488 = vmul.f32 %v477, %v400
    %v489 = vmul.f32 %v479, %v401
    %v490 = vmul.f32 %v481, %v402
    %v491 = vmul.f32 %v483, %v403
    %v492 = vmul.f32 %v484, %v460
    %v493 = vmul.f32 %v485, %v461
    %v494 = vmul.f32 %v486, %v462
    %v495 = vmul.f32 %v487, %v463
    %v496 = vmul.f32 %v488, %v464
    %v497 = vmul.f32 %v489, %v465
    %v498 = vmul.f32 %v490, %v466
    %v499 = vmul.f32 %v491, %v467
    %s500 = sld [smem:[#allocation2]]
    %v501 = vadd.f32 %v308, %v309
    %v502 = vadd.f32 %v501, %v310
    %v503 = vadd.f32 %v502, %v311
    %v504 = vadd.f32 %v503, %v312
    %v505 = vadd.f32 %v504, %v313
    %v506 = vadd.f32 %v505, %v314
    %v507 = vadd.f32 %v506, %v315
    %508 = vadd.xlane.f32.xlu0 %v507
    %v509 = vpop.xlane.xlu0 %508
    %v510 = vrot.slane %v509, 4
    %v511 = vadd.f32 %v509, %v510
    %v512 = vrot.slane %v511, 2
    %v513 = vadd.f32 %v511, %v512
    %v514 = vrot.slane %v513, 1
    %v515 = vadd.f32 %v513, %v514
    %s516 = vtos %v515
    %s517 = sadd.f32 %s500, %s516
    %s518 = scalar_lea.smem [#allocation2], 0
    %519 = sst [smem:[%s518]] %s517
    %s520 = sld [smem:[#allocation2 + $0x1]]
    %v521 = vadd.f32 %v492, %v493
    %v522 = vadd.f32 %v521, %v494
    %v523 = vadd.f32 %v522, %v495
    %v524 = vadd.f32 %v523, %v496
    %v525 = vadd.f32 %v524, %v497
    %v526 = vadd.f32 %v525, %v498
    %v527 = vadd.f32 %v526, %v499
    %528 = vadd.xlane.f32.xlu0 %v527
    %v529 = vpop.xlane.xlu0 %528
    %v530 = vrot.slane %v529, 4
    %v531 = vadd.f32 %v529, %v530
    %v532 = vrot.slane %v531, 2
    %v533 = vadd.f32 %v531, %v532
    %v534 = vrot.slane %v533, 1
    %v535 = vadd.f32 %v533, %v534
    %s536 = vtos %v535
    %s537 = sadd.f32 %s520, %s536
    %s538 = scalar_lea.smem [#allocation2], 1
    %539 = sst [smem:[%s538]] %s537
    %v540 = vld [vmem:[#allocation18] sm:$0xff]
    %v541 = vld [vmem:[#allocation18 + $0x8] sm:$0xff]
    %v542 = vld [vmem:[#allocation8] sm:$0xff]
    %v543 = vld [vmem:[#allocation8 + $0x8] sm:$0xff]
    %v544 = vld [vmem:[#allocation11] sm:$0xff]
    %v545 = vld [vmem:[#allocation11 + $0x8] sm:$0xff]
    %v546 = vsub.f32 %v542, %v544
    %v547 = vsub.f32 %v543, %v545
    %v548 = vand.u32 2147483647, %v546
    %v549 = vand.u32 2147483647, %v547
    %v550 = vld [vmem:[#allocation9] sm:$0xff]
    %v551 = vld [vmem:[#allocation9 + $0x8] sm:$0xff]
    %v552 = vld [vmem:[#allocation12] sm:$0xff]
    %v553 = vld [vmem:[#allocation12 + $0x8] sm:$0xff]
    %v554 = vsub.f32 %v550, %v552
    %v555 = vsub.f32 %v551, %v553
    %v556 = vand.u32 2147483647, %v554
    %v557 = vand.u32 2147483647, %v555
    %v558 = vadd.f32 %v548, %v556
    %v559 = vadd.f32 %v549, %v557
    %v560 = vld [vmem:[#allocation14] sm:$0xff]
    %v561 = vld [vmem:[#allocation14 + $0x8] sm:$0xff]
    %v562 = vld [vmem:[#allocation17] sm:$0xff]
    %v563 = vld [vmem:[#allocation17 + $0x8] sm:$0xff]
    %v564 = vsub.f32 %v560, %v562
    %v565 = vsub.f32 %v561, %v563
    %v566 = vand.u32 2147483647, %v564
    %v567 = vand.u32 2147483647, %v565
    %v568 = vld [vmem:[#allocation15] sm:$0xff]
    %v569 = vld [vmem:[#allocation15 + $0x8] sm:$0xff]
    %v570 = vld [vmem:[%s242] sm:$0xff]
    %v571 = vld [vmem:[%s242 + $0x8] sm:$0xff]
    %v572 = vsub.f32 %v568, %v570
    %v573 = vsub.f32 %v569, %v571
    %v574 = vand.u32 2147483647, %v572
    %v575 = vand.u32 2147483647, %v573
    %v576 = vadd.f32 %v566, %v574
    %v577 = vadd.f32 %v567, %v575
    %v578 = vmul.f32 %v576, 0.1
    %v579 = vmul.f32 %v577, 0.1
    %v580 = vadd.f32 %v558, %v578
    %v581 = vadd.f32 %v559, %v579
    %v582 = vmul.f32 %v580, %v540
    %v583 = vmul.f32 %v581, %v541
    %s584 = sld [smem:[#allocation2 + $0x2]]
    %v587 = vcombine.high %v582, %v582
    %v589 = vunpack.c.l.s4 1983009808
    %v590 = vunpack.c.0.s8 %v589
    %v591 = vlaneseq
    %v592 = vshrl.u32 %v591, 7
    %v593 = vsub.s32 %v590, %v592
    %v594 = vrot.slane %v582, %v593
    %v596 = vunpack.c.l.s4 1983009808
    %v597 = vunpack.c.0.s8 %v596
    %v598 = vlaneseq
    %v599 = vshrl.u32 %v598, 7
    %v600 = vsub.s32 %v597, %v599
    %v601 = vrot.slane %v587, %v600
    %v602 = vcombine.high %v594, %v594
    %v603 = vcombine.high %v601, %v601
    %v604 = vcombine.high %v583, %v583
    %v606 = vunpack.c.l.s4 1983009808
    %v607 = vunpack.c.0.s8 %v606
    %v608 = vlaneseq
    %v609 = vshrl.u32 %v608, 7
    %v610 = vsub.s32 %v607, %v609
    %v611 = vrot.slane %v583, %v610
    %v613 = vunpack.c.l.s4 1983009808
    %v614 = vunpack.c.0.s8 %v613
    %v615 = vlaneseq
    %v616 = vshrl.u32 %v615, 7
    %v617 = vsub.s32 %v614, %v616
    %v618 = vrot.slane %v604, %v617
    %v619 = vcombine.high %v611, %v611
    %v620 = vcombine.high %v618, %v618
    %vm629 = vcmask 1041408
    %v630 = vsel %vm629, %v594, 0.0
    %v631 = vsel %vm629, %v602, 0.0
    %v632 = vadd.f32 %v630, %v631
    %v633 = vsel %vm629, %v601, 0.0
    %v634 = vadd.f32 %v632, %v633
    %v635 = vsel %vm629, %v603, 0.0
    %v636 = vadd.f32 %v634, %v635
    %v637 = vsel %vm629, %v611, 0.0
    %v638 = vadd.f32 %v636, %v637
    %v639 = vsel %vm629, %v619, 0.0
    %v640 = vadd.f32 %v638, %v639
    %v641 = vsel %vm629, %v618, 0.0
    %v642 = vadd.f32 %v640, %v641
    %v643 = vsel %vm629, %v620, 0.0
    %v644 = vadd.f32 %v642, %v643
    %645 = vadd.xlane.f32.xlu0 %v644
    %v646 = vpop.xlane.xlu0 %645
    %v647 = vrot.slane %v646, 4
    %v648 = vadd.f32 %v646, %v647
    %v649 = vrot.slane %v648, 2
    %v650 = vadd.f32 %v648, %v649
    %v651 = vrot.slane %v650, 1
    %v652 = vadd.f32 %v650, %v651
    %s653 = vtos %v652
    %s654 = sadd.f32 %s584, %s653
    %s655 = scalar_lea.smem [#allocation2], 2
    %656 = sst [smem:[%s655]] %s654
    %s657 = sld [smem:[#allocation2 + $0x3]]
    %v660 = vcombine.high %v540, %v540
    %v662 = vunpack.c.l.s4 1983009808
    %v663 = vunpack.c.0.s8 %v662
    %v664 = vlaneseq
    %v665 = vshrl.u32 %v664, 7
    %v666 = vsub.s32 %v663, %v665
    %v667 = vrot.slane %v540, %v666
    %v669 = vunpack.c.l.s4 1983009808
    %v670 = vunpack.c.0.s8 %v669
    %v671 = vlaneseq
    %v672 = vshrl.u32 %v671, 7
    %v673 = vsub.s32 %v670, %v672
    %v674 = vrot.slane %v660, %v673
    %v675 = vcombine.high %v667, %v667
    %v676 = vcombine.high %v674, %v674
    %v677 = vcombine.high %v541, %v541
    %v679 = vunpack.c.l.s4 1983009808
    %v680 = vunpack.c.0.s8 %v679
    %v681 = vlaneseq
    %v682 = vshrl.u32 %v681, 7
    %v683 = vsub.s32 %v680, %v682
    %v684 = vrot.slane %v541, %v683
    %v686 = vunpack.c.l.s4 1983009808
    %v687 = vunpack.c.0.s8 %v686
    %v688 = vlaneseq
    %v689 = vshrl.u32 %v688, 7
    %v690 = vsub.s32 %v687, %v689
    %v691 = vrot.slane %v677, %v690
    %v692 = vcombine.high %v684, %v684
    %v693 = vcombine.high %v691, %v691
    %v702 = vsel %vm629, %v667, 0.0
    %v703 = vsel %vm629, %v675, 0.0
    %v704 = vadd.f32 %v702, %v703
    %v705 = vsel %vm629, %v674, 0.0
    %v706 = vadd.f32 %v704, %v705
    %v707 = vsel %vm629, %v676, 0.0
    %v708 = vadd.f32 %v706, %v707
    %v709 = vsel %vm629, %v684, 0.0
    %v710 = vadd.f32 %v708, %v709
    %v711 = vsel %vm629, %v692, 0.0
    %v712 = vadd.f32 %v710, %v711
    %v713 = vsel %vm629, %v691, 0.0
    %v714 = vadd.f32 %v712, %v713
    %v715 = vsel %vm629, %v693, 0.0
    %v716 = vadd.f32 %v714, %v715
    %717 = vadd.xlane.f32.xlu0 %v716
    %v718 = vpop.xlane.xlu0 %717
    %v719 = vrot.slane %v718, 4
    %v720 = vadd.f32 %v718, %v719
    %v721 = vrot.slane %v720, 2
    %v722 = vadd.f32 %v720, %v721
    %v723 = vrot.slane %v722, 1
    %v724 = vadd.f32 %v722, %v723
    %s725 = vtos %v724
    %s726 = sadd.f32 %s657, %s725
    %s727 = scalar_lea.smem [#allocation2], 3
    %728 = sst [smem:[%s727]] %s726
    // Predicated region
    $region90: #{tpu_custom_call.1} parent=1 // pred_check
      %p729 = pneg %p248
    $region91: #{tpu_custom_call.1} parent=1 // pred_check_branch
      %731 = sbr.rel (%p729) target = $region93
    $region92: #{tpu_custom_call.1} parent=1 // pred_region
      %v732 = vlaneseq
      %v733 = vshrl.u32 %v732, 7
      %v734 = vlaneseq
      %v735 = vand.u32 %v734, 127
      %vm736 = vcmp.eq.s32.totalorder %v733, 0
      %vm737 = vcmp.eq.s32.totalorder %v735, 0
      %vm738 = vmand %vm736, %vm737
      %s739 = sld [smem:[#allocation2]]
      %v740 = vstv %s739
      %v741 = vsel %vm738, %v740, 0.0
      %vm742 = vcmp.eq.s32.totalorder %v735, 1
      %vm743 = vmand %vm736, %vm742
      %s744 = sld [smem:[#allocation2 + $0x1]]
      %v745 = vstv %s744
      %v746 = vsel %vm743, %v745, %v741
      %vm747 = vcmp.eq.s32.totalorder %v735, 2
      %vm748 = vmand %vm736, %vm747
      %s749 = sld [smem:[#allocation2 + $0x2]]
      %v750 = vstv %s749
      %v751 = vsel %vm748, %v750, %v746
      %vm752 = vcmp.eq.s32.totalorder %v735, 3
      %vm753 = vmand %vm736, %vm752
      %s754 = sld [smem:[#allocation2 + $0x3]]
      %v755 = vstv %s754
      %v756 = vsel %vm753, %v755, %v751
      %757 = vst [vmem:[#allocation20] sm:$0xff] %v756
    $region93: #{tpu_custom_call.1} parent=1 // pred_fallthru
      _
    // Predicated region
    $region94: #{tpu_custom_call.1} parent=1 // pred_check
      _
    $region95: #{tpu_custom_call.1} parent=1 // pred_check_branch
      %759 = sbr.rel (0) target = $region97
    $region96: #{tpu_custom_call.1} parent=1 // pred_region
      %s761 = ssub.s32 128, 128
      %762 = vsyncadd [#allocation5], %s761
      %s764 = sshll.u32 [#allocation20], 4
      %s765 = int_to_ptr.vmem [resolvable:$true] %s764
      %767 = dma.vmem_to_hbm [thread:$0]  %s765, 128, %s11, [#allocation5]
    $region97: #{tpu_custom_call.1} parent=1 // pred_fallthru
      _
    // Predicated region
    $region98: #{tpu_custom_call.1} parent=1 // pred_check
      _
    $region99: #{tpu_custom_call.1} parent=1 // pred_check_branch
      %769 = sbr.rel (0) target = $region101
    $region100: #{tpu_custom_call.1} parent=1 // pred_region
      %770 = dma.done [#allocation5], 128
    $region101: #{tpu_custom_call.1} parent=1 // pred_fallthru
      _
    %771 = vsyncpa [#allocation4], 1
    %772 = vsyncpa [#allocation7], 1
    %773 = vsyncpa [#allocation10], 1
    %774 = vsyncpa [#allocation13], 1
    %775 = vsyncpa [#allocation16], 1
    %776 = vsyncpa [#allocation19], 1
    %777 = vsyncpa [#allocation5], 1

</llo_original>
